<compile_context>
chip_gen: v7x
topology: tpu7x:2x2x1
jax: 0.10.0
libtpu: 0.0.40
codegen_flags: <defaults>
</compile_context>

<pallas_src>
import functools

import jax
import jax.numpy as jnp
from jax.experimental import pallas as pl
from jax.experimental.pallas import tpu as pltpu


def _proj_head_kernel(x_ref, w1_ref, b1_ref, w2_ref, b2_ref, o_ref, *, n_sub):
    # x_ref : (bm, dim)        input dtype (cast to bf16 in-kernel on the VPU)
    # w1_ref: (dim, proj_dim)  bf16     b1_ref: (1, proj_dim) f32
    # w2_ref: (proj, proj)     bf16     b2_ref: (1, proj_dim) f32
    # o_ref : (bm, proj_dim)   output dtype
    w1 = w1_ref[...]
    w2 = w2_ref[...]
    b1 = b1_ref[...]
    b2 = b2_ref[...]
    bm = x_ref.shape[0]
    sub = bm // n_sub
    # Static unroll over sub-chunks: lets the LLO scheduler overlap one chunk's
    # VPU/XLU/EUP epilogue with the next chunk's MXU matmuls.
    for s in range(n_sub):
        rows = pl.ds(s * sub, sub)
        xs = x_ref[rows, :].astype(jnp.bfloat16)
        # First linear (MXU, bf16 in / f32 acc) + bias + ReLU in f32.
        h = jnp.dot(xs, w1, preferred_element_type=jnp.float32)
        h = jnp.maximum(h + b1, 0.0)
        # Second linear (MXU, bf16 in / f32 acc) + bias in f32.
        y = jnp.dot(h.astype(jnp.bfloat16), w2,
                    preferred_element_type=jnp.float32)
        y = y + b2
        # F.normalize(dim=-1): y / max(||y||, 1e-12) == y * rsqrt(max(||y||^2, 1e-24))
        sumsq = jnp.sum(y * y, axis=-1, keepdims=True)
        inv_norm = jax.lax.rsqrt(jnp.maximum(sumsq, 1e-24))
        o_ref[rows, :] = (y * inv_norm).astype(o_ref.dtype)


def _round_up(v, m):
    return (v + m - 1) // m * m


def _vmem_budget_bytes():
    """Generation-aware (budget for tile picking, Mosaic vmem limit)."""
    cap = 64 * 1024 * 1024  # conservative fallback: v7x has 64 MiB / TC
    try:
        get_info = getattr(pltpu, "get_tpu_info", None)
        if get_info is not None:
            info = get_info()
            cap = int(getattr(info, "vmem_capacity_bytes", cap) or cap)
    except Exception:
        pass
    budget = int(cap * 0.70)   # what _pick_block_m may plan to use
    limit = int(cap * 0.85)    # scoped VMEM limit handed to Mosaic
    return budget, limit


def _pick_block_m(requested, n_rows, dim, proj_dim, x_itemsize, out_itemsize,
                  vmem_budget):
    """Largest M tile fitting the VMEM budget, MXU/megacore friendly."""
    # Resident (double-buffered) bf16 weights + f32 biases.
    # TODO(synk): with pipeline_mode=pl.Buffered(1) on the constant operands
    # this would be 1x, not 2x; left double-buffered for compile safety.
    weight_bytes = 2 * ((dim + proj_dim) * proj_dim * 2 + 2 * proj_dim * 4)
    # Per output row: double-buffered x tile + double-buffered out tile
    # + f32/bf16 intermediates (h f32, h bf16, y f32).
    per_row = (2 * dim * x_itemsize
               + 2 * proj_dim * out_itemsize
               + 12 * proj_dim)
    avail = max(vmem_budget - weight_bytes, 8 * per_row)
    fit = max(8, avail // per_row)
    bm = min(requested, fit)
    # v7x has 2 TensorCores; keep >= 2 (balanced) steps on the "parallel" grid
    # axis when there are enough rows.  Near-free on 1-TC v5e/v6e.
    if n_rows >= 256:
        bm = min(bm, _round_up(pl.cdiv(n_rows, 2), 128))
    bm = min(bm, _round_up(n_rows, 8))
    if bm >= 128:
        bm = (bm // 128) * 128   # full MXU M passes (v5e MXU is 128-wide)
    else:
        bm = max(8, (bm // 8) * 8)
    return int(bm)


def _pick_n_sub(bm):
    for ns in (4, 2):
        if bm % ns == 0 and bm // ns >= 128:
            return ns
    return 1


@functools.partial(jax.jit,
                   static_argnames=("normalize_toks", "block_m", "out_dtype"))
def projection_head(x, w1, b1, w2, b2, normalize_toks=True, block_m=512,
                    out_dtype=None):
    """Pallas implementation of ProjectionHead.forward.

    x: (..., dim); w1: (dim, proj_dim); b1: (proj_dim,);
    w2: (proj_dim, proj_dim); b2: (proj_dim,).
    out_dtype: output dtype (default x.dtype). bf16 halves output HBM traffic
    in this mem-bound kernel if downstream accepts it.
    """
    orig_shape = x.shape
    dim = orig_shape[-1]
    proj_dim = w1.shape[1]
    out_dtype = x.dtype if out_dtype is None else jnp.dtype(out_dtype)

    x2d = x.reshape(-1, dim)
    n = x2d.shape[0]

    if not normalize_toks:
        # TODO(synk): normalize_toks=False path is plain JAX (XLA fuses a bare
        # MLP fine); the Pallas kernel covers the default (normalized) path.
        w1f, w2f = w1.astype(jnp.float32), w2.astype(jnp.float32)
        h = jnp.maximum(x2d.astype(jnp.float32) @ w1f
                        + b1[None, :].astype(jnp.float32), 0.0)
        y = h @ w2f + b2[None, :].astype(jnp.float32)
        return y.astype(out_dtype).reshape(*orig_shape[:-1], proj_dim)

    # bf16 MXU weights (no-op cast when already stored bf16); f32 biases.
    w1_bf = w1.astype(jnp.bfloat16)
    w2_bf = w2.astype(jnp.bfloat16)
    b1_2d = b1.reshape(1, proj_dim).astype(jnp.float32)
    b2_2d = b2.reshape(1, proj_dim).astype(jnp.float32)

    vmem_budget, vmem_limit = _vmem_budget_bytes()
    bm = _pick_block_m(block_m, n, dim, proj_dim,
                       x_itemsize=x2d.dtype.itemsize,
                       out_itemsize=jnp.dtype(out_dtype).itemsize,
                       vmem_budget=vmem_budget)
    n_sub = _pick_n_sub(bm)
    grid = (pl.cdiv(n, bm),)   # ragged tail handled by Pallas (masked stores)

    cost = pl.CostEstimate(
        flops=2 * n * (dim * proj_dim + proj_dim * proj_dim),
        transcendentals=n,  # one rsqrt per row
        bytes_accessed=(n * dim * x2d.dtype.itemsize
                        + n * proj_dim * jnp.dtype(out_dtype).itemsize
                        + (dim + proj_dim) * proj_dim * 2 + 2 * proj_dim * 4),
    )

    out = pl.pallas_call(
        functools.partial(_proj_head_kernel, n_sub=n_sub),
        out_shape=jax.ShapeDtypeStruct((n, proj_dim), out_dtype),
        grid_spec=pltpu.PrefetchScalarGridSpec(
            num_scalar_prefetch=0,
            grid=grid,
            in_specs=[
                pl.BlockSpec((bm, dim), lambda i: (i, 0)),
                # Constant-index operands: DMA'd once, VMEM-resident.
                # TODO(synk): pipeline_mode=pl.Buffered(1) would single-buffer
                # them (saves ~dim*proj_dim*2 B of VMEM, relevant on v7x's
                # 64 MiB at very large dim); left default for compile safety.
                pl.BlockSpec((dim, proj_dim), lambda i: (0, 0)),
                pl.BlockSpec((1, proj_dim), lambda i: (0, 0)),
                pl.BlockSpec((proj_dim, proj_dim), lambda i: (0, 0)),
                pl.BlockSpec((1, proj_dim), lambda i: (0, 0)),
            ],
            out_specs=pl.BlockSpec((bm, proj_dim), lambda i: (i, 0)),
        ),
        compiler_params=pltpu.CompilerParams(
            dimension_semantics=("parallel",),
            vmem_limit_bytes=vmem_limit,
        ),
        cost_estimate=cost,
    )(x2d, w1_bf, b1_2d, w2_bf, b2_2d)

    return out.reshape(*orig_shape[:-1], proj_dim)


def init_params(key, dim, proj_dim=256, param_dtype=jnp.bfloat16):
    """Deterministic synthetic params, PyTorch-Linear-style uniform init.

    Weights are stored (in, out) -- transpose of torch's (out, in) -- and in
    bfloat16 so the kernel's MXU inputs need no per-call cast pass.
    """
    k1, k2, k3, k4 = jax.random.split(key, 4)
    bound1 = 1.0 / (dim ** 0.5)
    bound2 = 1.0 / (proj_dim ** 0.5)
    w1 = jax.random.uniform(k1, (dim, proj_dim), jnp.float32, -bound1, bound1)
    b1 = jax.random.uniform(k2, (proj_dim,), jnp.float32, -bound1, bound1)
    w2 = jax.random.uniform(k3, (proj_dim, proj_dim), jnp.float32, -bound2, bound2)
    b2 = jax.random.uniform(k4, (proj_dim,), jnp.float32, -bound2, bound2)
    return w1.astype(param_dtype), b1, w2.astype(param_dtype), b2


if __name__ == "__main__":
    key = jax.random.PRNGKey(0)
    kx, kp = jax.random.split(key)

    B, S, DIM, PROJ_DIM = 2, 8, 32, 256
    x = jax.random.normal(kx, (B, S, DIM), jnp.float32)
    w1, b1, w2, b2 = init_params(kp, DIM, PROJ_DIM)

    out = projection_head(x, w1, b1, w2, b2, normalize_toks=True)
    out = jax.block_until_ready(out)

    # Plain-JAX f32 reference (weights upcast from their stored bf16), so the
    # only divergence is the in-kernel bf16 casts of x / h.
    w1f, w2f = w1.astype(jnp.float32), w2.astype(jnp.float32)
    b1f, b2f = b1.astype(jnp.float32), b2.astype(jnp.float32)
    h_ref = jnp.maximum(x.reshape(-1, DIM) @ w1f + b1f[None, :], 0.0)
    y_ref = h_ref @ w2f + b2f[None, :]
    y_ref = y_ref / jnp.maximum(
        jnp.sqrt(jnp.sum(y_ref * y_ref, axis=-1, keepdims=True)), 1e-12)
    y_ref = y_ref.reshape(B, S, PROJ_DIM)

    assert out.shape == (B, S, PROJ_DIM)
    assert bool(jnp.all(jnp.isfinite(out)))
    assert jnp.allclose(out, y_ref, atol=2e-2, rtol=2e-2), (
        float(jnp.max(jnp.abs(out - y_ref))))

    print("KERNEL_OK")
</pallas_src>

<mosaic_0001>
module attributes {stable_mosaic.version = 11 : i64} {
  func.func @_proj_head_kernel(%arg0: i32, %arg1: memref<16x32xf32, #tpu.memory_space<vmem>>, %arg2: memref<32x256xbf16, #tpu.memory_space<vmem>>, %arg3: memref<1x256xf32, #tpu.memory_space<vmem>>, %arg4: memref<256x256xbf16, #tpu.memory_space<vmem>>, %arg5: memref<1x256xf32, #tpu.memory_space<vmem>>, %arg6: memref<16x256xf32, #tpu.memory_space<vmem>>) attributes {dimension_semantics = [#tpu.dimension_semantics<parallel>], iteration_bounds = array<i64: 1>, scalar_prefetch = 0 : i64, scratch_operands = 0 : i64, tpu.core_type = #tpu.core_type<tc>, window_params = [{transform_indices = @transform_0, window_bounds = array<i64: 16, 32>}, {pipeline_mode = #tpu.pipeline_mode<synchronous>, transform_indices = @transform_1, window_bounds = array<i64: 32, 256>}, {pipeline_mode = #tpu.pipeline_mode<synchronous>, transform_indices = @transform_2, window_bounds = array<i64: 1, 256>}, {pipeline_mode = #tpu.pipeline_mode<synchronous>, transform_indices = @transform_3, window_bounds = array<i64: 256, 256>}, {pipeline_mode = #tpu.pipeline_mode<synchronous>, transform_indices = @transform_4, window_bounds = array<i64: 1, 256>}, {transform_indices = @transform_5, window_bounds = array<i64: 16, 256>}]} {
    %c0 = arith.constant 0 : index
    %c0_0 = arith.constant 0 : index
    %0 = vector.load %arg2[%c0, %c0_0] : memref<32x256xbf16, #tpu.memory_space<vmem>>, vector<32x256xbf16>
    %c0_1 = arith.constant 0 : index
    %c0_2 = arith.constant 0 : index
    %1 = vector.load %arg4[%c0_1, %c0_2] : memref<256x256xbf16, #tpu.memory_space<vmem>>, vector<256x256xbf16>
    %c0_3 = arith.constant 0 : index
    %c0_4 = arith.constant 0 : index
    %2 = vector.load %arg3[%c0_3, %c0_4] : memref<1x256xf32, #tpu.memory_space<vmem>>, vector<1x256xf32>
    %c0_5 = arith.constant 0 : index
    %c0_6 = arith.constant 0 : index
    %3 = vector.load %arg5[%c0_5, %c0_6] : memref<1x256xf32, #tpu.memory_space<vmem>>, vector<1x256xf32>
    %c0_7 = arith.constant 0 : index
    %c0_8 = arith.constant 0 : index
    %4 = vector.load %arg1[%c0_7, %c0_8] : memref<16x32xf32, #tpu.memory_space<vmem>>, vector<16x32xf32>
    %5 = arith.truncf %4 : vector<16x32xf32> to vector<16x32xbf16>
    %cst = arith.constant dense<0.000000e+00> : vector<16x256xf32>
    %6 = tpu.matmul %5, %0, %cst {dimension_numbers = #tpu.dot_dimension_numbers<[1], [0], [0], [1], [0, 0, 1, 1], [], []>} : vector<16x32xbf16>, vector<32x256xbf16>, vector<16x256xf32> -> vector<16x256xf32>
    %7 = vector.broadcast %2 : vector<1x256xf32> to vector<16x256xf32>
    %8 = arith.addf %6, %7 : vector<16x256xf32>
    %cst_9 = arith.constant 0.000000e+00 : f32
    %9 = vector.broadcast %cst_9 : f32 to vector<16x256xf32>
    %10 = arith.maximumf %8, %9 : vector<16x256xf32>
    %11 = arith.truncf %10 : vector<16x256xf32> to vector<16x256xbf16>
    %cst_10 = arith.constant dense<0.000000e+00> : vector<16x256xf32>
    %12 = tpu.matmul %11, %1, %cst_10 {dimension_numbers = #tpu.dot_dimension_numbers<[1], [0], [0], [1], [0, 0, 1, 1], [], []>} : vector<16x256xbf16>, vector<256x256xbf16>, vector<16x256xf32> -> vector<16x256xf32>
    %13 = vector.broadcast %3 : vector<1x256xf32> to vector<16x256xf32>
    %14 = arith.addf %12, %13 : vector<16x256xf32>
    %15 = arith.mulf %14, %14 : vector<16x256xf32>
    %cst_11 = arith.constant dense<0.000000e+00> : vector<16xf32>
    %16 = vector.multi_reduction <add>, %15, %cst_11 [1] : vector<16x256xf32> to vector<16xf32>
    %17 = vector.shape_cast %16 : vector<16xf32> to vector<16x1xf32>
    %cst_12 = arith.constant 1.000000e-24 : f32
    %18 = vector.broadcast %cst_12 : f32 to vector<16x1xf32>
    %19 = arith.maximumf %17, %18 : vector<16x1xf32>
    %20 = math.rsqrt %19 : vector<16x1xf32>
    %21 = vector.broadcast %20 : vector<16x1xf32> to vector<16x256xf32>
    %22 = arith.mulf %14, %21 : vector<16x256xf32>
    %c0_13 = arith.constant 0 : index
    %c0_14 = arith.constant 0 : index
    %23 = vector.load %arg6[%c0_13, %c0_14] : memref<16x256xf32, #tpu.memory_space<vmem>>, vector<16x256xf32>
    tpu.vector_store %arg6[%c0_13, %c0_14], %22 {strides = array<i32>} : memref<16x256xf32, #tpu.memory_space<vmem>>, vector<16x256xf32>,
    return
  }
  func.func @transform_0(%arg0: i32) -> (i32, i32) {
    %c0_i32 = arith.constant 0 : i32
    %c0_i32_0 = arith.constant 0 : i32
    return %arg0, %c0_i32 : i32, i32
  }
  func.func @transform_1(%arg0: i32) -> (i32, i32) {
    %c0_i32 = arith.constant 0 : i32
    %c0_i32_0 = arith.constant 0 : i32
    %c0_i32_1 = arith.constant 0 : i32
    return %c0_i32, %c0_i32_0 : i32, i32
  }
  func.func @transform_2(%arg0: i32) -> (i32, i32) {
    %c0_i32 = arith.constant 0 : i32
    %c0_i32_0 = arith.constant 0 : i32
    %c0_i32_1 = arith.constant 0 : i32
    return %c0_i32, %c0_i32_0 : i32, i32
  }
  func.func @transform_3(%arg0: i32) -> (i32, i32) {
    %c0_i32 = arith.constant 0 : i32
    %c0_i32_0 = arith.constant 0 : i32
    %c0_i32_1 = arith.constant 0 : i32
    return %c0_i32, %c0_i32_0 : i32, i32
  }
  func.func @transform_4(%arg0: i32) -> (i32, i32) {
    %c0_i32 = arith.constant 0 : i32
    %c0_i32_0 = arith.constant 0 : i32
    %c0_i32_1 = arith.constant 0 : i32
    return %c0_i32, %c0_i32_0 : i32, i32
  }
  func.func @transform_5(%arg0: i32) -> (i32, i32) {
    %c0_i32 = arith.constant 0 : i32
    %c0_i32_0 = arith.constant 0 : i32
    return %arg0, %c0_i32 : i32, i32
  }
}

</mosaic_0001>

<llo_original>
// kernel: projection_head.1
$region0: #{projection_head.1}
  #allocation0 [shape = 'u32[]', space=smem, size = 0x4, offset = 0x4, fixed_abs, tag = 'smem constant byte address 0x4 - core index']
  #allocation1 [shape = 'u32[144,128]{1,0:T(1,128)}', space=vmem, size = 0x12000, scoped, tag = 'internal scratch']
  %s0 = inlined_call_operand.hbm [shape: f32[16,32], index: 0, kind: input, shape index: {}]
  %s1 = inlined_call_operand.hbm [shape: bf16[32,256], index: 1, kind: input, shape index: {}]
  %s2 = inlined_call_operand.vmem [shape: f32[1,256], index: 2, kind: input, shape index: {}]
  %s3 = inlined_call_operand.hbm [shape: bf16[256,256], index: 3, kind: input, shape index: {}]
  %s4 = inlined_call_operand.vmem [shape: f32[1,256], index: 4, kind: input, shape index: {}]
  %s5 = inlined_call_operand.hbm [shape: f32[16,256], index: 5, kind: output, shape index: {}]
  %s6 = sld [smem:[#allocation0]]
  $region42: #{projection_head.1} parent=0
    _
  %s8 = ssub.s32 1, %s6
  %s9 = scalar_select 0, %s8, %s6
  $region1: #{projection_head.1} parent=0
    #allocation2 [shape = 'u8[8192]{0}', space=vmem, size = 0x2000, scoped, tag = 'input window, operand 0, single buffered']
    #allocation3 [shape = 's32[1]{0}', space=sflag, size = 0x4, scoped, tag = 'scoped memory for projection_head.1']
    #allocation4 [shape = 's32[1]{0}', space=sflag, size = 0x4, scoped, tag = 'scoped memory for projection_head.1']
    #allocation5 [shape = 'u8[16384]{0}', space=vmem, size = 0x4000, scoped, tag = 'input window, operand 1, single buffered']
    #allocation6 [shape = 's32[1]{0}', space=sflag, size = 0x4, scoped, tag = 'scoped memory for projection_head.1']
    #allocation7 [shape = 'u8[131072]{0}', space=vmem, size = 0x20000, scoped, tag = 'input window, operand 3, single buffered']
    #allocation8 [shape = 'u8[16384]{0}', space=vmem, size = 0x4000, scoped, tag = 'output window, operand 0, single buffered']
    %10 = vsyncpa [#allocation3], 0
    %11 = vsyncpa [#allocation6], 0
    %12 = vsyncpa [#allocation4], 0
    // Predicated region
    $region2: #{projection_head.1} parent=1 // pred_check
      _
    $region3: #{projection_head.1} parent=1 // pred_check_branch
      %14 = sbr.rel (0) target = $region5
    $region4: #{projection_head.1} parent=1 // pred_region
      %s16 = ssub.s32 256, 256
      %17 = vsyncadd [#allocation3], %s16
      %s18 = sshll.u32 [#allocation2], 4
      %s19 = int_to_ptr.vmem [resolvable:$true] %s18
      %24 = dma.hbm_to_vmem [thread:$0]  %s0, 256, %s19, [#allocation3], 128, 128, 8
    $region5: #{projection_head.1} parent=1 // pred_fallthru
      _
    // Predicated region
    $region6: #{projection_head.1} parent=1 // pred_check
      _
    $region7: #{projection_head.1} parent=1 // pred_check_branch
      %26 = sbr.rel (0) target = $region9
    $region8: #{projection_head.1} parent=1 // pred_region
      %s28 = ssub.s32 512, 512
      %29 = vsyncadd [#allocation6], %s28
      %s30 = sshll.u32 [#allocation5], 4
      %s31 = int_to_ptr.vmem [resolvable:$true] %s30
      %36 = dma.hbm_to_vmem [thread:$0]  %s1, 512, %s31, [#allocation6], 128, 128, 8
    $region9: #{projection_head.1} parent=1 // pred_fallthru
      _
    // Predicated region
    $region10: #{projection_head.1} parent=1 // pred_check
      _
    $region11: #{projection_head.1} parent=1 // pred_check_branch
      %38 = sbr.rel (0) target = $region13
    $region12: #{projection_head.1} parent=1 // pred_region
      _
    $region13: #{projection_head.1} parent=1 // pred_fallthru
      _
    // Predicated region
    $region14: #{projection_head.1} parent=1 // pred_check
      _
    $region15: #{projection_head.1} parent=1 // pred_check_branch
      %40 = sbr.rel (0) target = $region17
    $region16: #{projection_head.1} parent=1 // pred_region
      %s42 = ssub.s32 4096, 4096
      %43 = vsyncadd [#allocation6], %s42
      %s44 = sshll.u32 [#allocation7], 4
      %s45 = int_to_ptr.vmem [resolvable:$true] %s44
      %50 = dma.hbm_to_vmem [thread:$0]  %s3, 4096, %s45, [#allocation6], 128, 128, 8
    $region17: #{projection_head.1} parent=1 // pred_fallthru
      _
    // Predicated region
    $region18: #{projection_head.1} parent=1 // pred_check
      _
    $region19: #{projection_head.1} parent=1 // pred_check_branch
      %52 = sbr.rel (0) target = $region21
    $region20: #{projection_head.1} parent=1 // pred_region
      _
    $region21: #{projection_head.1} parent=1 // pred_fallthru
      _
    // Predicated region
    $region22: #{projection_head.1} parent=1 // pred_check
      _
    $region23: #{projection_head.1} parent=1 // pred_check_branch
      %54 = sbr.rel (0) target = $region25
    $region24: #{projection_head.1} parent=1 // pred_region
      %55 = dma.done [#allocation3], 256
    $region25: #{projection_head.1} parent=1 // pred_fallthru
      _
    // Predicated region
    $region26: #{projection_head.1} parent=1 // pred_check
      _
    $region27: #{projection_head.1} parent=1 // pred_check_branch
      %57 = sbr.rel (0) target = $region29
    $region28: #{projection_head.1} parent=1 // pred_region
      %58 = dma.done [#allocation6], 512
    $region29: #{projection_head.1} parent=1 // pred_fallthru
      _
    // Predicated region
    $region30: #{projection_head.1} parent=1 // pred_check
      _
    $region31: #{projection_head.1} parent=1 // pred_check_branch
      %60 = sbr.rel (0) target = $region33
    $region32: #{projection_head.1} parent=1 // pred_region
      %61 = dma.done [#allocation6], 4096
    $region33: #{projection_head.1} parent=1 // pred_fallthru
      _
    %v63 = vld [vmem:[#allocation5] sm:$0xff]
    %v64 = vld [vmem:[#allocation5 + $0x8] sm:$0xff]
    %v65 = vld [vmem:[#allocation5 + $0x10] sm:$0xff]
    %v66 = vld [vmem:[#allocation5 + $0x18] sm:$0xff]
    %v67 = vld [vmem:[#allocation7] sm:$0xff]
    %v68 = vld [vmem:[#allocation7 + $0x8] sm:$0xff]
    %v69 = vld [vmem:[#allocation7 + $0x10] sm:$0xff]
    %v70 = vld [vmem:[#allocation7 + $0x18] sm:$0xff]
    %v71 = vld [vmem:[#allocation7 + $0x20] sm:$0xff]
    %v72 = vld [vmem:[#allocation7 + $0x28] sm:$0xff]
    %v73 = vld [vmem:[#allocation7 + $0x30] sm:$0xff]
    %v74 = vld [vmem:[#allocation7 + $0x38] sm:$0xff]
    %v75 = vld [vmem:[#allocation7 + $0x40] sm:$0xff]
    %v76 = vld [vmem:[#allocation7 + $0x48] sm:$0xff]
    %v77 = vld [vmem:[#allocation7 + $0x50] sm:$0xff]
    %v78 = vld [vmem:[#allocation7 + $0x58] sm:$0xff]
    %v79 = vld [vmem:[#allocation7 + $0x60] sm:$0xff]
    %v80 = vld [vmem:[#allocation7 + $0x68] sm:$0xff]
    %v81 = vld [vmem:[#allocation7 + $0x70] sm:$0xff]
    %v82 = vld [vmem:[#allocation7 + $0x78] sm:$0xff]
    %v83 = vld [vmem:[#allocation7 + $0x80] sm:$0xff]
    %v84 = vld [vmem:[#allocation7 + $0x88] sm:$0xff]
    %v85 = vld [vmem:[#allocation7 + $0x90] sm:$0xff]
    %v86 = vld [vmem:[#allocation7 + $0x98] sm:$0xff]
    %v87 = vld [vmem:[#allocation7 + $0xa0] sm:$0xff]
    %v88 = vld [vmem:[#allocation7 + $0xa8] sm:$0xff]
    %v89 = vld [vmem:[#allocation7 + $0xb0] sm:$0xff]
    %v90 = vld [vmem:[#allocation7 + $0xb8] sm:$0xff]
    %v91 = vld [vmem:[#allocation7 + $0xc0] sm:$0xff]
    %v92 = vld [vmem:[#allocation7 + $0xc8] sm:$0xff]
    %v93 = vld [vmem:[#allocation7 + $0xd0] sm:$0xff]
    %v94 = vld [vmem:[#allocation7 + $0xd8] sm:$0xff]
    %v95 = vld [vmem:[#allocation7 + $0xe0] sm:$0xff]
    %v96 = vld [vmem:[#allocation7 + $0xe8] sm:$0xff]
    %v97 = vld [vmem:[#allocation7 + $0xf0] sm:$0xff]
    %v98 = vld [vmem:[#allocation7 + $0xf8] sm:$0xff]
    %v99 = vld [vmem:[%s2] sm:$0x3]
    %v100 = vld [vmem:[%s4] sm:$0x3]
    %v101 = vld [vmem:[#allocation2] sm:$0xff]
    %v102 = vld [vmem:[#allocation2 + $0x8] sm:$0xff]
    %v103 = vpack.c.bf16 %v102, %v101
    %v105 = vlaneseq
    %v106 = vshrl.u32 %v105, 7
    %v107 = vsub.s32 0, %v106
    %v108 = vrot.slane %v99, %v107
    %v109 = vlaneseq
    %v110 = vshrl.u32 %v109, 7
    %v111 = vsub.s32 1, %v110
    %v112 = vrot.slane %v99, %v111
    %v119 = vunpack.c.l.b16 %v63
    %v120 = vunpack.c.h.b16 %v63
    %v121 = vunpack.c.l.b16 %v64
    %v122 = vunpack.c.h.b16 %v64
    %v123 = vunpack.c.l.b16 %v65
    %v124 = vunpack.c.h.b16 %v65
    %v125 = vunpack.c.l.b16 %v66
    %v126 = vunpack.c.h.b16 %v66
    %v127 = vpack.c.b16 %v121, %v119
    %v128 = vpack.c.b16 %v122, %v120
    %v129 = vpack.c.b16 %v125, %v123
    %v130 = vpack.c.b16 %v126, %v124
    %vm135 = vcmask 261120
    %v137 = vsel %vm135, %v103, 0
    %139 = vmatprep.subr.bf16.mxu0 %v128
    %140 = vmatpush1.bf16.msra.mxu0 %v127
    %141 = vmatprep.subr.bf16.mxu0 %v130
    %142 = vmatpush1.bf16.msra.mxu0 %v129
    %143 = vmatprep.subr.bf16.mxu0 0
    %144 = vmatpush1.bf16.msra.mxu0 0
    %145 = vmatprep.subr.bf16.mxu0 0
    %146 = vmatpush1.bf16.msra.mxu0 0
    %147 = vmatprep.subr.bf16.mxu0 0
    %148 = vmatpush1.bf16.msra.mxu0 0
    %149 = vmatprep.subr.bf16.mxu0 0
    %150 = vmatpush1.bf16.msra.mxu0 0
    %151 = vmatprep.subr.bf16.mxu0 0
    %152 = vmatpush1.bf16.msra.mxu0 0
    %153 = vmatprep.subr.bf16.mxu0 0
    %154 = vmatpush1.bf16.msra.mxu0 0
    %155 = vmatprep.subr.bf16.mxu0 0
    %156 = vmatpush1.bf16.msra.mxu0 0
    %157 = vmatprep.subr.bf16.mxu0 0
    %158 = vmatpush1.bf16.msra.mxu0 0
    %159 = vmatprep.subr.bf16.mxu0 0
    %160 = vmatpush1.bf16.msra.mxu0 0
    %161 = vmatprep.subr.bf16.mxu0 0
    %162 = vmatpush1.bf16.msra.mxu0 0
    %163 = vmatprep.subr.bf16.mxu0 0
    %164 = vmatpush1.bf16.msra.mxu0 0
    %165 = vmatprep.subr.bf16.mxu0 0
    %166 = vmatpush1.bf16.msra.mxu0 0
    %167 = vmatprep.subr.bf16.mxu0 0
    %168 = vmatpush1.bf16.msra.mxu0 0
    %169 = vmatprep.subr.bf16.mxu0 0
    %170 = vmatpush1.bf16.msra.mxu0 0
    %171 = vmatprep.mubr.bf16.mxu0 0
    %172 = vmatmul.mubr.bf16.gmra.mrb[0].mxu0 %v137
    %v173 = vpop.f32.mrb[0].mxu0
    %v174 = vadd.f32 %v108, %v173
    %v175 = vpop.f32.mrb[0].mxu0
    %v176 = vadd.f32 %v112, %v175
    %v177 = vpop.f32.mrb[0].mxu0
    %v178 = vadd.f32 %v108, %v177
    %v179 = vpop.f32.mrb[0].mxu0
    %v180 = vadd.f32 %v112, %v179
    %181 = vdwg.mxu0
    %v182 = vmax.f32 %v174, 0.0
    %v183 = vmax.f32 %v176, 0.0
    %v184 = vmax.f32 %v178, 0.0
    %v185 = vmax.f32 %v180, 0.0
    %v186 = vpack.c.bf16 %v184, %v182
    %v187 = vpack.c.bf16 %v185, %v183
    %v189 = vlaneseq
    %v190 = vshrl.u32 %v189, 7
    %v191 = vsub.s32 0, %v190
    %v192 = vrot.slane %v100, %v191
    %v193 = vlaneseq
    %v194 = vshrl.u32 %v193, 7
    %v195 = vsub.s32 1, %v194
    %v196 = vrot.slane %v100, %v195
    %v231 = vunpack.c.l.b16 %v67
    %v232 = vunpack.c.h.b16 %v67
    %v233 = vunpack.c.l.b16 %v68
    %v234 = vunpack.c.h.b16 %v68
    %v235 = vunpack.c.l.b16 %v69
    %v236 = vunpack.c.h.b16 %v69
    %v237 = vunpack.c.l.b16 %v70
    %v238 = vunpack.c.h.b16 %v70
    %v239 = vunpack.c.l.b16 %v71
    %v240 = vunpack.c.h.b16 %v71
    %v241 = vunpack.c.l.b16 %v72
    %v242 = vunpack.c.h.b16 %v72
    %v243 = vunpack.c.l.b16 %v73
    %v244 = vunpack.c.h.b16 %v73
    %v245 = vunpack.c.l.b16 %v74
    %v246 = vunpack.c.h.b16 %v74
    %v247 = vunpack.c.l.b16 %v75
    %v248 = vunpack.c.h.b16 %v75
    %v249 = vunpack.c.l.b16 %v76
    %v250 = vunpack.c.h.b16 %v76
    %v251 = vunpack.c.l.b16 %v77
    %v252 = vunpack.c.h.b16 %v77
    %v253 = vunpack.c.l.b16 %v78
    %v254 = vunpack.c.h.b16 %v78
    %v255 = vunpack.c.l.b16 %v79
    %v256 = vunpack.c.h.b16 %v79
    %v257 = vunpack.c.l.b16 %v80
    %v258 = vunpack.c.h.b16 %v80
    %v259 = vunpack.c.l.b16 %v81
    %v260 = vunpack.c.h.b16 %v81
    %v261 = vunpack.c.l.b16 %v82
    %v262 = vunpack.c.h.b16 %v82
    %v263 = vunpack.c.l.b16 %v83
    %v264 = vunpack.c.h.b16 %v83
    %v265 = vunpack.c.l.b16 %v84
    %v266 = vunpack.c.h.b16 %v84
    %v267 = vunpack.c.l.b16 %v85
    %v268 = vunpack.c.h.b16 %v85
    %v269 = vunpack.c.l.b16 %v86
    %v270 = vunpack.c.h.b16 %v86
    %v271 = vunpack.c.l.b16 %v87
    %v272 = vunpack.c.h.b16 %v87
    %v273 = vunpack.c.l.b16 %v88
    %v274 = vunpack.c.h.b16 %v88
    %v275 = vunpack.c.l.b16 %v89
    %v276 = vunpack.c.h.b16 %v89
    %v277 = vunpack.c.l.b16 %v90
    %v278 = vunpack.c.h.b16 %v90
    %v279 = vunpack.c.l.b16 %v91
    %v280 = vunpack.c.h.b16 %v91
    %v281 = vunpack.c.l.b16 %v92
    %v282 = vunpack.c.h.b16 %v92
    %v283 = vunpack.c.l.b16 %v93
    %v284 = vunpack.c.h.b16 %v93
    %v285 = vunpack.c.l.b16 %v94
    %v286 = vunpack.c.h.b16 %v94
    %v287 = vunpack.c.l.b16 %v95
    %v288 = vunpack.c.h.b16 %v95
    %v289 = vunpack.c.l.b16 %v96
    %v290 = vunpack.c.h.b16 %v96
    %v291 = vunpack.c.l.b16 %v97
    %v292 = vunpack.c.h.b16 %v97
    %v293 = vunpack.c.l.b16 %v98
    %v294 = vunpack.c.h.b16 %v98
    %v295 = vpack.c.b16 %v233, %v231
    %v296 = vpack.c.b16 %v234, %v232
    %v297 = vpack.c.b16 %v237, %v235
    %v298 = vpack.c.b16 %v238, %v236
    %v299 = vpack.c.b16 %v241, %v239
    %v300 = vpack.c.b16 %v242, %v240
    %v301 = vpack.c.b16 %v245, %v243
    %v302 = vpack.c.b16 %v246, %v244
    %v303 = vpack.c.b16 %v249, %v247
    %v304 = vpack.c.b16 %v250, %v248
    %v305 = vpack.c.b16 %v253, %v251
    %v306 = vpack.c.b16 %v254, %v252
    %v307 = vpack.c.b16 %v257, %v255
    %v308 = vpack.c.b16 %v258, %v256
    %v309 = vpack.c.b16 %v261, %v259
    %v310 = vpack.c.b16 %v262, %v260
    %v311 = vpack.c.b16 %v265, %v263
    %v312 = vpack.c.b16 %v266, %v264
    %v313 = vpack.c.b16 %v269, %v267
    %v314 = vpack.c.b16 %v270, %v268
    %v315 = vpack.c.b16 %v273, %v271
    %v316 = vpack.c.b16 %v274, %v272
    %v317 = vpack.c.b16 %v277, %v275
    %v318 = vpack.c.b16 %v278, %v276
    %v319 = vpack.c.b16 %v281, %v279
    %v320 = vpack.c.b16 %v282, %v280
    %v321 = vpack.c.b16 %v285, %v283
    %v322 = vpack.c.b16 %v286, %v284
    %v323 = vpack.c.b16 %v289, %v287
    %v324 = vpack.c.b16 %v290, %v288
    %v325 = vpack.c.b16 %v293, %v291
    %v326 = vpack.c.b16 %v294, %v292
    %359 = vmatprep.subr.bf16.mxu0 %v296
    %360 = vmatpush1.bf16.msra.mxu0 %v295
    %361 = vmatprep.subr.bf16.mxu0 %v298
    %362 = vmatpush1.bf16.msra.mxu0 %v297
    %363 = vmatprep.subr.bf16.mxu0 %v300
    %364 = vmatpush1.bf16.msra.mxu0 %v299
    %365 = vmatprep.subr.bf16.mxu0 %v302
    %366 = vmatpush1.bf16.msra.mxu0 %v301
    %367 = vmatprep.subr.bf16.mxu0 %v304
    %368 = vmatpush1.bf16.msra.mxu0 %v303
    %369 = vmatprep.subr.bf16.mxu0 %v306
    %370 = vmatpush1.bf16.msra.mxu0 %v305
    %371 = vmatprep.subr.bf16.mxu0 %v308
    %372 = vmatpush1.bf16.msra.mxu0 %v307
    %373 = vmatprep.subr.bf16.mxu0 %v310
    %374 = vmatpush1.bf16.msra.mxu0 %v309
    %375 = vmatprep.subr.bf16.mxu0 %v312
    %376 = vmatpush1.bf16.msra.mxu0 %v311
    %377 = vmatprep.subr.bf16.mxu0 %v314
    %378 = vmatpush1.bf16.msra.mxu0 %v313
    %379 = vmatprep.subr.bf16.mxu0 %v316
    %380 = vmatpush1.bf16.msra.mxu0 %v315
    %381 = vmatprep.subr.bf16.mxu0 %v318
    %382 = vmatpush1.bf16.msra.mxu0 %v317
    %383 = vmatprep.subr.bf16.mxu0 %v320
    %384 = vmatpush1.bf16.msra.mxu0 %v319
    %385 = vmatprep.subr.bf16.mxu0 %v322
    %386 = vmatpush1.bf16.msra.mxu0 %v321
    %387 = vmatprep.subr.bf16.mxu0 %v324
    %388 = vmatpush1.bf16.msra.mxu0 %v323
    %389 = vmatprep.subr.bf16.mxu0 %v326
    %390 = vmatpush1.bf16.msra.mxu0 %v325
    %391 = vmatprep.mubr.bf16.mxu0 %v187
    %392 = vmatmul.mubr.bf16.gmra.mrb[0].mxu0 %v186
    %v393 = vpop.f32.mrb[0].mxu0
    %v394 = vadd.f32 %v192, %v393
    %v395 = vpop.f32.mrb[0].mxu0
    %v396 = vadd.f32 %v196, %v395
    %v397 = vpop.f32.mrb[0].mxu0
    %v398 = vadd.f32 %v192, %v397
    %v399 = vpop.f32.mrb[0].mxu0
    %v400 = vadd.f32 %v196, %v399
    %401 = vdwg.mxu0
    %v402 = vmul.f32 %v394, %v394
    %v403 = vmul.f32 %v396, %v396
    %v404 = vmul.f32 %v398, %v398
    %v405 = vmul.f32 %v400, %v400
    %v406 = vadd.f32 %v402, %v403
    %407 = vadd.xlane.f32.xlu0 %v406
    %v408 = vpop.xlane.xlu0 %407
    %v409 = vadd.f32 %v404, %v405
    %410 = vadd.xlane.f32.xlu0 %v409
    %v411 = vpop.xlane.xlu0 %410
    %v412 = vmax.f32 %v408, 1e-24
    %v413 = vmax.f32 %v411, 1e-24
    %v414 = vrsqrt.pop %v412
    %v415 = vrsqrt.pop %v413
    %v416 = vmul.f32 %v394, %v414
    %v417 = vmul.f32 %v396, %v414
    %v418 = vmul.f32 %v398, %v415
    %v419 = vmul.f32 %v400, %v415
    %420 = vst [vmem:[#allocation8] sm:$0xff] %v416
    %421 = vst [vmem:[#allocation8 + $0x8] sm:$0xff] %v417
    %422 = vst [vmem:[#allocation8 + $0x10] sm:$0xff] %v418
    %423 = vst [vmem:[#allocation8 + $0x18] sm:$0xff] %v419
    // Predicated region
    $region34: #{projection_head.1} parent=1 // pred_check
      _
    $region35: #{projection_head.1} parent=1 // pred_check_branch
      %425 = sbr.rel (0) target = $region37
    $region36: #{projection_head.1} parent=1 // pred_region
      %s427 = ssub.s32 512, 512
      %428 = vsyncadd [#allocation4], %s427
      %s429 = sshll.u32 [#allocation8], 4
      %s430 = int_to_ptr.vmem [resolvable:$true] %s429
      %435 = dma.vmem_to_hbm [thread:$0]  %s430, 512, %s5, [#allocation4], 256, 256, 16
    $region37: #{projection_head.1} parent=1 // pred_fallthru
      _
    // Predicated region
    $region38: #{projection_head.1} parent=1 // pred_check
      _
    $region39: #{projection_head.1} parent=1 // pred_check_branch
      %437 = sbr.rel (0) target = $region41
    $region40: #{projection_head.1} parent=1 // pred_region
      %438 = dma.done [#allocation4], 512
    $region41: #{projection_head.1} parent=1 // pred_fallthru
      _
    %439 = vsyncpa [#allocation3], 1
    %440 = vsyncpa [#allocation6], 1
    %441 = vsyncpa [#allocation4], 1

</llo_original>
